<compile_context>
chip_gen: v6e
topology: v6e:2x2x1
jax: 0.10.0
libtpu: 0.0.40
codegen_flags: <defaults>
</compile_context>

<pallas_src>
import functools

import jax
import jax.numpy as jnp
from jax.experimental import pallas as pl
from jax.experimental.pallas import tpu as pltpu


def _embed_kernel(x_ref, w_ref, b_ref, cls_ref, o_ref):
    """One grid step: patch-embed GEMM for one image x one weight column tile.

    x_ref:   (N+1, Kp) bf16  row 0 is all-zero, rows 1..N are patchified pixels
    w_ref:   (Kp, tn)  bf16  column tile of the conv-as-matmul weight
    b_ref:   (1, tn)   f32   bias tile
    cls_ref: (1, tn)   f32   cls-token tile
    o_ref:   (N+1, tn)       row 0 = cls token, rows 1..N = patch embeddings
    """
    acc = jnp.dot(x_ref[...], w_ref[...], preferred_element_type=jnp.float32)
    n1, tn = o_ref.shape
    # Row 0 of `acc` is exactly zero (zero input row), so adding a per-row
    # selected bias (cls for row 0, conv bias for rows 1..N) fuses the cls
    # concat with no jnp.concatenate, no cross-sublane shift, and a single
    # full-block store.
    row = jax.lax.broadcasted_iota(jnp.int32, (n1, tn), 0)
    bias = jnp.where(row == 0, cls_ref[...], b_ref[...])
    o_ref[...] = (acc + bias).astype(o_ref.dtype)


def _pick_col_tile(n1, kp, ep, out_bytes, budget=24 * 1024 * 1024):
    """Largest lane-dense column tile whose double-buffered footprint fits."""
    def footprint(tn):
        return 2 * (n1 * kp * 2 + kp * tn * 2 + n1 * tn * out_bytes + 2 * tn * 4)

    if footprint(ep) <= budget:
        return ep                    # whole weight VMEM-resident
    for tn in (1024, 512, 384, 256, 128):
        if ep % tn == 0 and footprint(tn) <= budget:
            return tn
    return 128                       # ep is always a multiple of 128 here


def patch_embed_fused(x_patches, w, b, cls, out_dtype=jnp.float32):
    """x_patches (B, N+1, Kp) bf16 (row 0 zeros), w (Kp, Ep) bf16,
    b/cls (1, Ep) f32 -> (B, N+1, Ep) out_dtype with the cls token in row 0."""
    B, N1, Kp = x_patches.shape
    _, Ep = w.shape
    out_bytes = jnp.dtype(out_dtype).itemsize
    tn = _pick_col_tile(N1, Kp, Ep, out_bytes)

    cost = pl.CostEstimate(
        flops=2 * B * N1 * Kp * Ep,
        transcendentals=0,
        bytes_accessed=(x_patches.size * 2 + w.size * 2 + b.size * 4
                        + cls.size * 4 + B * N1 * Ep * out_bytes),
    )

    if tn == Ep:
        # Full weight/bias/cls resident in VMEM: each streamed from HBM once.
        grid = (B,)
        in_specs = [
            pl.BlockSpec((None, N1, Kp), lambda bi: (bi, 0, 0)),
            pl.BlockSpec((Kp, Ep), lambda bi: (0, 0)),
            pl.BlockSpec((1, Ep), lambda bi: (0, 0)),
            pl.BlockSpec((1, Ep), lambda bi: (0, 0)),
        ]
        out_specs = pl.BlockSpec((None, N1, Ep), lambda bi: (bi, 0, 0))
        dims = ("parallel",)
    else:
        # Weight-stationary grid order: column tile OUTER, batch INNER, so the
        # weight/bias/cls block index is constant across the inner sweep.
        grid = (Ep // tn, B)
        in_specs = [
            pl.BlockSpec((None, N1, Kp), lambda j, bi: (bi, 0, 0)),
            pl.BlockSpec((Kp, tn), lambda j, bi: (0, j)),
            pl.BlockSpec((1, tn), lambda j, bi: (0, j)),
            pl.BlockSpec((1, tn), lambda j, bi: (0, j)),
        ]
        out_specs = pl.BlockSpec((None, N1, tn), lambda j, bi: (bi, 0, j))
        dims = ("parallel", "parallel")

    return pl.pallas_call(
        _embed_kernel,
        out_shape=jax.ShapeDtypeStruct((B, N1, Ep), out_dtype),
        grid_spec=pl.GridSpec(grid=grid, in_specs=in_specs, out_specs=out_specs),
        compiler_params=pltpu.CompilerParams(
            dimension_semantics=dims,
            vmem_limit_bytes=32 * 1024 * 1024,
        ),
        cost_estimate=cost,
    )(x_patches, w, b, cls)


@functools.partial(jax.jit, static_argnames=("patch_size", "out_dtype"))
def embed_layer_forward(x, conv_w, conv_b, cls_token, patch_size,
                        out_dtype=jnp.float32):
    """x: (B, C, H, W) NCHW.  Returns (B, N+1, E) in out_dtype."""
    B, C, H, W = x.shape
    ph, pw = patch_size
    E = conv_w.shape[0]
    nh, nw = H // ph, W // pw
    N = nh * nw
    K = C * ph * pw

    # Lane-dense padding targets.
    Kp = max(128, ((K + 127) // 128) * 128)
    Ep = max(128, ((E + 127) // 128) * 128)

    # Patchify (B,C,H,W) -> (B,N,K), flatten order (C,ph,pw) to match the
    # PyTorch Conv2d weight layout.  The bf16 cast is chained so XLA fuses it
    # into the transpose pass; the zero cls row and K padding are one pad op.
    xp = (x.reshape(B, C, nh, ph, nw, pw)
           .transpose(0, 2, 4, 1, 3, 5)
           .reshape(B, N, K)
           .astype(jnp.bfloat16))
    xp = jnp.pad(xp, ((0, 0), (1, 0), (0, Kp - K)))   # row 0 := zeros (cls slot)

    # Conv weight (E,C,ph,pw) -> (Kp,Ep) bf16; bias & cls token (1,Ep) f32.
    w = jnp.pad(conv_w.reshape(E, K).T.astype(jnp.bfloat16),
                ((0, Kp - K), (0, Ep - E)))
    b = jnp.pad(conv_b.reshape(1, E).astype(jnp.float32), ((0, 0), (0, Ep - E)))
    cls = jnp.pad(cls_token.reshape(1, E).astype(jnp.float32),
                  ((0, 0), (0, Ep - E)))

    out = patch_embed_fused(xp, w, b, cls, out_dtype=out_dtype)  # (B, N+1, Ep)
    if Ep != E:
        # TODO(synk): downstream layers could consume the Ep-padded activation
        # directly and skip this XLA copy; kept to return the module's exact
        # (B, N+1, E) shape.
        out = out[:, :, :E]
    # dropout p=0.0 -> identity; pos_embedding unused in forward (matches PyTorch).
    return out


if __name__ == "__main__":
    # Small deterministic config: B=2, C=4, image 16x16, patch 4x4, E=32.
    B, C, H, W = 2, 4, 16, 16
    ph, pw = 4, 4
    E = 32
    N = (H // ph) * (W // pw)  # 16

    key = jax.random.PRNGKey(0)
    kx, kw, kb, kc = jax.random.split(key, 4)

    x = jax.random.normal(kx, (B, C, H, W), dtype=jnp.float32)
    conv_w = jax.random.normal(kw, (E, C, ph, pw), dtype=jnp.float32) * 0.02
    conv_b = jax.random.normal(kb, (E,), dtype=jnp.float32) * 0.02
    # PyTorch inits cls_token to zeros; use small random values so the fused
    # cls row is actually exercised by the check.
    cls_token = jax.random.normal(kc, (1, 1, E), dtype=jnp.float32) * 0.02
    pos_embedding = jnp.zeros((1, N, E), dtype=jnp.float32)  # declared, unused in forward

    out = embed_layer_forward(x, conv_w, conv_b, cls_token, (ph, pw))
    out = jax.block_until_ready(out)

    # Plain-JAX f32 reference (conv == patchify + matmul).
    xp = x.reshape(B, C, H // ph, ph, W // pw, pw).transpose(0, 2, 4, 1, 3, 5)
    xp = xp.reshape(B * N, C * ph * pw)
    ref = (xp @ conv_w.reshape(E, -1).T + conv_b).reshape(B, N, E)
    ref = jnp.concatenate([jnp.broadcast_to(cls_token, (B, 1, E)), ref], axis=1)

    assert out.shape == (B, N + 1, E), out.shape
    # bf16 MXU inputs with f32 accumulation -> loose-ish tolerance vs f32 ref.
    assert jnp.allclose(out, ref, atol=1e-2, rtol=1e-2), float(jnp.max(jnp.abs(out - ref)))
    print("KERNEL_OK")
</pallas_src>

<mosaic_0001>
module attributes {stable_mosaic.version = 11 : i64} {
  func.func @_embed_kernel(%arg0: i32, %arg1: memref<1x17x128xbf16, #tpu.memory_space<vmem>>, %arg2: memref<128x128xbf16, #tpu.memory_space<vmem>>, %arg3: memref<1x128xf32, #tpu.memory_space<vmem>>, %arg4: memref<1x128xf32, #tpu.memory_space<vmem>>, %arg5: memref<1x17x128xf32, #tpu.memory_space<vmem>>) attributes {dimension_semantics = [#tpu.dimension_semantics<parallel>], iteration_bounds = array<i64: 2>, scalar_prefetch = 0 : i64, scratch_operands = 0 : i64, tpu.core_type = #tpu.core_type<tc>, window_params = [{transform_indices = @transform_0, window_bounds = array<i64: 1, 17, 128>}, {pipeline_mode = #tpu.pipeline_mode<synchronous>, transform_indices = @transform_1, window_bounds = array<i64: 128, 128>}, {pipeline_mode = #tpu.pipeline_mode<synchronous>, transform_indices = @transform_2, window_bounds = array<i64: 1, 128>}, {pipeline_mode = #tpu.pipeline_mode<synchronous>, transform_indices = @transform_3, window_bounds = array<i64: 1, 128>}, {transform_indices = @transform_4, window_bounds = array<i64: 1, 17, 128>}]} {
    %c0 = arith.constant 0 : index
    %c0_0 = arith.constant 0 : index
    %c0_1 = arith.constant 0 : index
    %0 = vector.load %arg1[%c0, %c0_0, %c0_1] : memref<1x17x128xbf16, #tpu.memory_space<vmem>>, vector<1x17x128xbf16>
    %1 = vector.shape_cast %0 : vector<1x17x128xbf16> to vector<17x128xbf16>
    %c0_2 = arith.constant 0 : index
    %c0_3 = arith.constant 0 : index
    %2 = vector.load %arg2[%c0_2, %c0_3] : memref<128x128xbf16, #tpu.memory_space<vmem>>, vector<128x128xbf16>
    %cst = arith.constant dense<0.000000e+00> : vector<17x128xf32>
    %3 = tpu.matmul %1, %2, %cst {dimension_numbers = #tpu.dot_dimension_numbers<[1], [0], [0], [1], [0, 0, 1, 1], [], []>} : vector<17x128xbf16>, vector<128x128xbf16>, vector<17x128xf32> -> vector<17x128xf32>
    %4 = tpu.iota {dimensions = array<i32: 0>} : vector<17x128xi32>
    %c0_i32 = arith.constant 0 : i32
    %5 = vector.broadcast %c0_i32 : i32 to vector<17x128xi32>
    %6 = arith.cmpi eq, %4, %5 : vector<17x128xi32>
    %c0_4 = arith.constant 0 : index
    %c0_5 = arith.constant 0 : index
    %7 = vector.load %arg4[%c0_4, %c0_5] : memref<1x128xf32, #tpu.memory_space<vmem>>, vector<1x128xf32>
    %c0_6 = arith.constant 0 : index
    %c0_7 = arith.constant 0 : index
    %8 = vector.load %arg3[%c0_6, %c0_7] : memref<1x128xf32, #tpu.memory_space<vmem>>, vector<1x128xf32>
    %9 = vector.shape_cast %7 : vector<1x128xf32> to vector<1x128xf32>
    %10 = vector.broadcast %9 : vector<1x128xf32> to vector<17x128xf32>
    %11 = vector.shape_cast %8 : vector<1x128xf32> to vector<1x128xf32>
    %12 = vector.broadcast %11 : vector<1x128xf32> to vector<17x128xf32>
    %13 = arith.select %6, %10, %12 : vector<17x128xi1>, vector<17x128xf32>
    %14 = arith.addf %3, %13 : vector<17x128xf32>
    %c0_8 = arith.constant 0 : index
    %c0_9 = arith.constant 0 : index
    %c0_10 = arith.constant 0 : index
    %15 = vector.load %arg5[%c0_8, %c0_9, %c0_10] : memref<1x17x128xf32, #tpu.memory_space<vmem>>, vector<1x17x128xf32>
    %16 = vector.shape_cast %15 : vector<1x17x128xf32> to vector<17x128xf32>
    %17 = vector.shape_cast %14 : vector<17x128xf32> to vector<1x17x128xf32>
    tpu.vector_store %arg5[%c0_8, %c0_9, %c0_10], %17 {strides = array<i32>} : memref<1x17x128xf32, #tpu.memory_space<vmem>>, vector<1x17x128xf32>,
    return
  }
  func.func @transform_0(%arg0: i32) -> (i32, i32, i32) {
    %c0_i32 = arith.constant 0 : i32
    %c0_i32_0 = arith.constant 0 : i32
    %c0_i32_1 = arith.constant 0 : i32
    return %arg0, %c0_i32, %c0_i32_0 : i32, i32, i32
  }
  func.func @transform_1(%arg0: i32) -> (i32, i32) {
    %c0_i32 = arith.constant 0 : i32
    %c0_i32_0 = arith.constant 0 : i32
    %c0_i32_1 = arith.constant 0 : i32
    return %c0_i32, %c0_i32_0 : i32, i32
  }
  func.func @transform_2(%arg0: i32) -> (i32, i32) {
    %c0_i32 = arith.constant 0 : i32
    %c0_i32_0 = arith.constant 0 : i32
    %c0_i32_1 = arith.constant 0 : i32
    return %c0_i32, %c0_i32_0 : i32, i32
  }
  func.func @transform_3(%arg0: i32) -> (i32, i32) {
    %c0_i32 = arith.constant 0 : i32
    %c0_i32_0 = arith.constant 0 : i32
    %c0_i32_1 = arith.constant 0 : i32
    return %c0_i32, %c0_i32_0 : i32, i32
  }
  func.func @transform_4(%arg0: i32) -> (i32, i32, i32) {
    %c0_i32 = arith.constant 0 : i32
    %c0_i32_0 = arith.constant 0 : i32
    %c0_i32_1 = arith.constant 0 : i32
    return %arg0, %c0_i32, %c0_i32_0 : i32, i32, i32
  }
}

</mosaic_0001>

<llo_original>
// kernel: embed_layer_forward.1
$region0: #{embed_layer_forward.1}
  #allocation0 [shape = 'u32[]', space=smem, size = 0x4, offset = 0x4, fixed_abs, tag = 'smem constant byte address 0x4 - core index']
  #allocation1 [shape = 'u32[144,128]{1,0:T(1,128)}', space=vmem, size = 0x12000, scoped, tag = 'internal scratch']
  %s0 = inlined_call_operand.vmem [shape: bf16[2,17,128], index: 0, kind: input, shape index: {}]
  %s1 = inlined_call_operand.vmem [shape: bf16[128,128], index: 1, kind: input, shape index: {}]
  %s2 = inlined_call_operand.vmem [shape: f32[1,128], index: 2, kind: input, shape index: {}]
  %s3 = inlined_call_operand.vmem [shape: f32[1,128], index: 3, kind: input, shape index: {}]
  %s4 = inlined_call_operand.vmem [shape: f32[2,17,128], index: 4, kind: output, shape index: {}]
  %s5 = sld [smem:[#allocation0]]
  $region49: #{embed_layer_forward.1} parent=0
    _
  %s7 = ssub.s32 1, %s5
  %s8 = scalar_select 0, %s7, %s5
  loop: start=0, step=1, limit=4
  $region2: #{embed_layer_forward.1} parent=0 // loop_pre_header
    _
  $region3: #{embed_layer_forward.1} parent=0 // loop_header
    %s10 = sphi 0, %s14
    %p11 = scmp.ge.s32.totalorder %s10, 4
    %s20 = sphi 0, %s22
    %s23 = sphi 0, %s20
    %s24 = sphi 0, %s23
    %s40 = sphi 0, %s24
    %s44 = sphi 0, %s44
    %s46 = sphi 0, %s44
    %s47 = sphi 0, %s46
    %s61 = sphi 0, %s47
    %s65 = sphi 0, %s65
    %s67 = sphi 0, %s65
    %s68 = sphi 0, %s67
    %s82 = sphi 0, %s68
    %s86 = sphi 0, %s86
    %s88 = sphi 0, %s86
    %s89 = sphi 0, %s88
    %s103 = sphi 0, %s89
    %s109 = sphi 0, %s111
    %s112 = sphi 0, %s109
    %s113 = sphi 0, %s112
    %s129 = sphi 0, %s113
  $region4: #{embed_layer_forward.1} parent=0 // loop_header_branch
    %13 = sbr.rel (%p11) target = $region8
  $region5: #{embed_layer_forward.1} parent=0 // loop_body
    %s15 = ssub.s32 %s10, 1
    %s16 = ssub.s32 %s10, 2
    %s17 = sadd.s32 %s10, 1
    %s18 = ssub.s32 %s10, %s17
    %p19 = scmp.eq.s32.totalorder %s18, 0
    %s21 = sadd.s32 %s20, 1
    %s22 = scalar_select %p19, %s20, %s21
    %p25 = pneg %p19
    %p26 = scmp.eq.s32.totalorder %s10, 1
    %p27 = por %p25, %p26
    %p28 = scmp.ne.s32.totalorder %s20, %s23
    %p29 = scmp.eq.s32.totalorder %s10, 0
    %p30 = por %p28, %p29
    %p31 = scmp.ne.s32.totalorder %s20, %s23
    %p32 = scmp.eq.s32.totalorder %s15, 1
    %p33 = por %p31, %p32
    %p34 = scmp.ne.s32.totalorder %s23, %s24
    %p35 = scmp.eq.s32.totalorder %s15, 0
    %p36 = por %p34, %p35
    %p37 = scmp.ne.s32.totalorder %s23, %s24
    %p38 = scmp.eq.s32.totalorder %s16, 1
    %p39 = por %p37, %p38
    %p41 = scmp.ne.s32.totalorder %s24, %s40
    %p42 = scmp.eq.s32.totalorder %s16, 0
    %p43 = por %p41, %p42
    %s45 = sadd.s32 %s44, 1
    %p48 = scmp.eq.s32.totalorder %s10, 1
    %p49 = scmp.ne.s32.totalorder %s44, %s46
    %p50 = scmp.eq.s32.totalorder %s10, 0
    %p51 = por %p49, %p50
    %p52 = scmp.ne.s32.totalorder %s44, %s46
    %p53 = scmp.eq.s32.totalorder %s15, 1
    %p54 = por %p52, %p53
    %p55 = scmp.ne.s32.totalorder %s46, %s47
    %p56 = scmp.eq.s32.totalorder %s15, 0
    %p57 = por %p55, %p56
    %p58 = scmp.ne.s32.totalorder %s46, %s47
    %p59 = scmp.eq.s32.totalorder %s16, 1
    %p60 = por %p58, %p59
    %p62 = scmp.ne.s32.totalorder %s47, %s61
    %p63 = scmp.eq.s32.totalorder %s16, 0
    %p64 = por %p62, %p63
    %s66 = sadd.s32 %s65, 1
    %p69 = scmp.eq.s32.totalorder %s10, 1
    %p70 = scmp.ne.s32.totalorder %s65, %s67
    %p71 = scmp.eq.s32.totalorder %s10, 0
    %p72 = por %p70, %p71
    %p73 = scmp.ne.s32.totalorder %s65, %s67
    %p74 = scmp.eq.s32.totalorder %s15, 1
    %p75 = por %p73, %p74
    %p76 = scmp.ne.s32.totalorder %s67, %s68
    %p77 = scmp.eq.s32.totalorder %s15, 0
    %p78 = por %p76, %p77
    %p79 = scmp.ne.s32.totalorder %s67, %s68
    %p80 = scmp.eq.s32.totalorder %s16, 1
    %p81 = por %p79, %p80
    %p83 = scmp.ne.s32.totalorder %s68, %s82
    %p84 = scmp.eq.s32.totalorder %s16, 0
    %p85 = por %p83, %p84
    %s87 = sadd.s32 %s86, 1
    %p90 = scmp.eq.s32.totalorder %s10, 1
    %p91 = scmp.ne.s32.totalorder %s86, %s88
    %p92 = scmp.eq.s32.totalorder %s10, 0
    %p93 = por %p91, %p92
    %p94 = scmp.ne.s32.totalorder %s86, %s88
    %p95 = scmp.eq.s32.totalorder %s15, 1
    %p96 = por %p94, %p95
    %p97 = scmp.ne.s32.totalorder %s88, %s89
    %p98 = scmp.eq.s32.totalorder %s15, 0
    %p99 = por %p97, %p98
    %p100 = scmp.ne.s32.totalorder %s88, %s89
    %p101 = scmp.eq.s32.totalorder %s16, 1
    %p102 = por %p100, %p101
    %p104 = scmp.ne.s32.totalorder %s89, %s103
    %p105 = scmp.eq.s32.totalorder %s16, 0
    %p106 = por %p104, %p105
    %s107 = ssub.s32 %s10, %s17
    %p108 = scmp.eq.s32.totalorder %s107, 0
    %s110 = sadd.s32 %s109, 1
    %s111 = scalar_select %p108, %s109, %s110
    %p114 = pneg %p108
    %p115 = scmp.eq.s32.totalorder %s10, 1
    %p116 = por %p114, %p115
    %p117 = scmp.ne.s32.totalorder %s109, %s112
    %p118 = scmp.eq.s32.totalorder %s10, 0
    %p119 = por %p117, %p118
    %p120 = scmp.ne.s32.totalorder %s109, %s112
    %p121 = scmp.eq.s32.totalorder %s15, 1
    %p122 = por %p120, %p121
    %p123 = scmp.ne.s32.totalorder %s112, %s113
    %p124 = scmp.eq.s32.totalorder %s15, 0
    %p125 = por %p123, %p124
    %p126 = scmp.ne.s32.totalorder %s112, %s113
    %p127 = scmp.eq.s32.totalorder %s16, 1
    %p128 = por %p126, %p127
    %p130 = scmp.ne.s32.totalorder %s113, %s129
    %p131 = scmp.eq.s32.totalorder %s16, 0
    %p132 = por %p130, %p131
    %p133 = scmp.le.s32.totalorder 1, %s10
    %p134 = scmp.lt.s32.totalorder %s10, 3
    %p135 = pnand %p133, %p134
    %p136 = pneg %p135
    // Predicated region
    $region9: #{embed_layer_forward.1} parent=5 // pred_check
      _
    $region10: #{embed_layer_forward.1} parent=5 // pred_check_branch
      %138 = sbr.rel (%p135) target = $region12
    $region11: #{embed_layer_forward.1} parent=5 // pred_region
      %s139 = ssub.s32 %s10, 1
      // Predicated region
      $region13: #{embed_layer_forward.1} parent=11 // pred_check
        %p140 = pneg %p57
      $region14: #{embed_layer_forward.1} parent=11 // pred_check_branch
        %142 = sbr.rel (%p140) target = $region16
      $region15: #{embed_layer_forward.1} parent=11 // pred_region
        _
      $region16: #{embed_layer_forward.1} parent=11 // pred_fallthru
        _
      // Predicated region
      $region17: #{embed_layer_forward.1} parent=11 // pred_check
        %p143 = pneg %p78
      $region18: #{embed_layer_forward.1} parent=11 // pred_check_branch
        %145 = sbr.rel (%p143) target = $region20
      $region19: #{embed_layer_forward.1} parent=11 // pred_region
        _
      $region20: #{embed_layer_forward.1} parent=11 // pred_fallthru
        _
      // Predicated region
      $region21: #{embed_layer_forward.1} parent=11 // pred_check
        %p146 = pneg %p99
      $region22: #{embed_layer_forward.1} parent=11 // pred_check_branch
        %148 = sbr.rel (%p146) target = $region24
      $region23: #{embed_layer_forward.1} parent=11 // pred_region
        _
      $region24: #{embed_layer_forward.1} parent=11 // pred_fallthru
        _
    $region12: #{embed_layer_forward.1} parent=5 // pred_fallthru
      _
    %p149 = scmp.lt.s32.totalorder %s10, 2
    // Predicated region
    $region25: #{embed_layer_forward.1} parent=5 // pred_check
      %p150 = pneg %p149
    $region26: #{embed_layer_forward.1} parent=5 // pred_check_branch
      %152 = sbr.rel (%p150) target = $region28
    $region27: #{embed_layer_forward.1} parent=5 // pred_region
      // Predicated region
      $region29: #{embed_layer_forward.1} parent=27 // pred_check
        %p153 = pneg %p30
      $region30: #{embed_layer_forward.1} parent=27 // pred_check_branch
        %155 = sbr.rel (%p153) target = $region32
      $region31: #{embed_layer_forward.1} parent=27 // pred_region
        %p156 = scmp.lt.s32.totalorder %s10, 1
        %s157 = scalar_select %p156, %s10, 1
        %s158 = smul.addr %s157, 3
        %s159 = smul.addr %s158, 4
        %s160 = scalar_lea.vmem %s0, %s159
      $region32: #{embed_layer_forward.1} parent=27 // pred_fallthru
        _
    $region28: #{embed_layer_forward.1} parent=5 // pred_fallthru
      _
    %p161 = scmp.le.s32.totalorder 1, %s10
    %p162 = scmp.lt.s32.totalorder %s10, 3
    %p163 = pnand %p161, %p162
    %p164 = pneg %p163
    // Predicated region
    $region33: #{embed_layer_forward.1} parent=5 // pred_check
      _
    $region34: #{embed_layer_forward.1} parent=5 // pred_check_branch
      %166 = sbr.rel (%p163) target = $region36
    $region35: #{embed_layer_forward.1} parent=5 // pred_region
      %s167 = ssub.s32 %s10, 1
      %p168 = scmp.lt.s32.totalorder %s15, 1
      %s169 = scalar_select %p168, %s15, 1
      %s170 = smul.addr %s169, 3
      %s171 = smul.addr %s170, 4
      %s172 = scalar_lea.vmem %s0, %s171
      %p173 = pneg %p36
      %p174 = pneg %p33
      %p175 = pneg %p57
      %p176 = pneg %p54
      %p177 = pneg %p78
      %p178 = pneg %p75
      %p179 = pneg %p99
      %p180 = pneg %p96
      %p181 = pneg %p125
      %p182 = pneg %p122
      %p183 = scmp.lt.s32.totalorder %s15, 1
      %s184 = scalar_select %p183, %s15, 1
      %s185 = smul.addr %s184, 3
      %s186 = smul.addr %s185, 8
      %s187 = scalar_lea.vmem %s4, %s186
      %p188 = scmp.lt.s32.totalorder %s15, 1
      %s189 = scalar_select %p188, %s15, 1
      %s190 = smul.addr %s189, 3
      %s191 = smul.addr %s190, 4
      %s192 = scalar_lea.vmem %s0, %s191
      %p193 = scmp.lt.s32.totalorder %s15, 1
      %s194 = scalar_select %p193, %s15, 1
      %s195 = smul.addr %s194, 3
      %s196 = smul.addr %s195, 8
      %s197 = scalar_lea.vmem %s4, %s196
      %v199 = vld [vmem:[%s192] sm:$0xf]
      %v200 = vld [vmem:[%s192 + $0x4] sm:$0xf]
      %v201 = vld [vmem:[%s192 + $0x8] sm:$0x1]
      %v202 = vld [vmem:[%s1] sm:$0xf]
      %v203 = vld [vmem:[%s1 + $0x4] sm:$0xf]
      %v204 = vld [vmem:[%s1 + $0x8] sm:$0xf]
      %v205 = vld [vmem:[%s1 + $0xc] sm:$0xf]
      %v206 = vld [vmem:[%s1 + $0x10] sm:$0xf]
      %v207 = vld [vmem:[%s1 + $0x14] sm:$0xf]
      %v208 = vld [vmem:[%s1 + $0x18] sm:$0xf]
      %v209 = vld [vmem:[%s1 + $0x1c] sm:$0xf]
      %v210 = vld [vmem:[%s1 + $0x20] sm:$0xf]
      %v211 = vld [vmem:[%s1 + $0x24] sm:$0xf]
      %v212 = vld [vmem:[%s1 + $0x28] sm:$0xf]
      %v213 = vld [vmem:[%s1 + $0x2c] sm:$0xf]
      %v214 = vld [vmem:[%s1 + $0x30] sm:$0xf]
      %v215 = vld [vmem:[%s1 + $0x34] sm:$0xf]
      %v216 = vld [vmem:[%s1 + $0x38] sm:$0xf]
      %v217 = vld [vmem:[%s1 + $0x3c] sm:$0xf]
      %v218 = vlaneseq
      %v219 = vshrl.u32 %v218, 7
      %v220 = vadd.s32 %v219, 8
      %v221 = vadd.s32 %v219, 16
      %vm222 = vcmp.eq.s32.totalorder %v219, 0
      %vm223 = vcmp.eq.s32.totalorder %v220, 0
      %vm224 = vcmp.eq.s32.totalorder %v221, 0
      %v225 = vld [vmem:[%s3] sm:$0x1]
      %v226 = vld [vmem:[%s2] sm:$0x1]
      %v228 = vlaneseq
      %v229 = vshrl.u32 %v228, 7
      %v230 = vsub.s32 0, %v229
      %v231 = vrot.slane %v225, %v230
      %v234 = vlaneseq
      %v235 = vshrl.u32 %v234, 7
      %v236 = vsub.s32 0, %v235
      %v237 = vrot.slane %v226, %v236
      %v239 = vsel %vm222, %v231, %v237
      %v240 = vsel %vm223, %v231, %v237
      %v241 = vsel %vm224, %v231, %v237
      %v245 = vunpack.c.l.b16 %v199
      %v246 = vunpack.c.l.b16 %v200
      %v247 = vunpack.c.l.b16 %v201
      %v248 = vpack.c.b16 %v246, %v245
      %v249 = vpack.c.b16 %v247, %v247
      %v268 = vunpack.c.l.b16 %v202
      %v269 = vunpack.c.l.b16 %v203
      %v270 = vunpack.c.l.b16 %v204
      %v271 = vunpack.c.l.b16 %v205
      %v272 = vunpack.c.l.b16 %v206
      %v273 = vunpack.c.l.b16 %v207
      %v274 = vunpack.c.l.b16 %v208
      %v275 = vunpack.c.l.b16 %v209
      %v276 = vunpack.c.l.b16 %v210
      %v277 = vunpack.c.l.b16 %v211
      %v278 = vunpack.c.l.b16 %v212
      %v279 = vunpack.c.l.b16 %v213
      %v280 = vunpack.c.l.b16 %v214
      %v281 = vunpack.c.l.b16 %v215
      %v282 = vunpack.c.l.b16 %v216
      %v283 = vunpack.c.l.b16 %v217
      %v284 = vpack.c.b16 %v269, %v268
      %v285 = vpack.c.b16 %v271, %v270
      %v286 = vpack.c.b16 %v273, %v272
      %v287 = vpack.c.b16 %v275, %v274
      %v288 = vpack.c.b16 %v277, %v276
      %v289 = vpack.c.b16 %v279, %v278
      %v290 = vpack.c.b16 %v281, %v280
      %v291 = vpack.c.b16 %v283, %v282
      %300 = vmatprep.subr.bf16.mxu0 0
      %301 = vmatpush1.bf16.msra.mxu0 %v291
      %302 = vmatprep.subr.bf16.mxu0 0
      %303 = vmatpush1.bf16.msra.mxu0 %v290
      %304 = vmatprep.subr.bf16.mxu0 0
      %305 = vmatpush1.bf16.msra.mxu0 %v289
      %306 = vmatprep.subr.bf16.mxu0 0
      %307 = vmatpush1.bf16.msra.mxu0 %v288
      %308 = vmatprep.subr.bf16.mxu0 0
      %309 = vmatpush1.bf16.msra.mxu0 %v287
      %310 = vmatprep.subr.bf16.mxu0 0
      %311 = vmatpush1.bf16.msra.mxu0 %v286
      %312 = vmatprep.subr.bf16.mxu0 0
      %313 = vmatpush1.bf16.msra.mxu0 %v285
      %314 = vmatprep.subr.bf16.mxu0 0
      %315 = vmatpush1.bf16.msra.mxu0 %v284
      %316 = vmatprep.subr.bf16.mxu0 0
      %317 = vmatpush2.bf16.msra.mxu0 0
      %318 = vmatprep.subr.bf16.mxu0 0
      %319 = vmatpush2.bf16.msra.mxu0 0
      %320 = vmatprep.subr.bf16.mxu0 0
      %321 = vmatpush2.bf16.msra.mxu0 0
      %322 = vmatprep.subr.bf16.mxu0 0
      %323 = vmatpush2.bf16.msra.mxu0 0
      %324 = vmatprep.subr.bf16.mxu0 0
      %325 = vmatpush2.bf16.msra.mxu0 0
      %326 = vmatprep.subr.bf16.mxu0 0
      %327 = vmatpush2.bf16.msra.mxu0 0
      %328 = vmatprep.subr.bf16.mxu0 0
      %329 = vmatpush2.bf16.msra.mxu0 0
      %330 = vmatprep.subr.bf16.mxu0 0
      %331 = vmatpush2.bf16.msra.mxu0 0
      %332 = vmatprep.mubr.bf16.mxu0 0
      %333 = vmatmul.mubr.bf16.gmra.mxu0 %v248
      %v334 = vpop.f32.mrf.mxu0
      %v335 = vadd.f32 %v239, %v334
      %v336 = vpop.f32.mrf.mxu0
      %v337 = vpop.f32.mrf.mxu0
      %v338 = vadd.f32 %v240, %v337
      %v339 = vpop.f32.mrf.mxu0
      %340 = vmatprep.mubr.bf16.mxu0 0
      %341 = vmatmul.mubr.bf16.gmra.mxu0 %v249
      %v342 = vpop.f32.mrf.mxu0
      %v343 = vadd.f32 %v241, %v342
      %v344 = vpop.f32.mrf.mxu0
      %v345 = vpop.f32.mrf.mxu0
      %v346 = vpop.f32.mrf.mxu0
      %347 = vdwg.mxu0
      %348 = vst [vmem:[%s197] sm:$0xff] %v335
      %349 = vst [vmem:[%s197 + $0x8] sm:$0xff] %v338
      %350 = vst [vmem:[%s197 + $0x10] sm:$0x1] %v343
      %p351 = scmp.lt.s32.totalorder %s15, 1
      %s352 = scalar_select %p351, %s15, 1
      %s353 = smul.addr %s352, 3
      %s354 = smul.addr %s353, 8
      %s355 = scalar_lea.vmem %s4, %s354
      // Predicated region
      $region37: #{embed_layer_forward.1} parent=35 // pred_check
        %p356 = pneg %p122
      $region38: #{embed_layer_forward.1} parent=35 // pred_check_branch
        %358 = sbr.rel (%p356) target = $region40
      $region39: #{embed_layer_forward.1} parent=35 // pred_region
        _
      $region40: #{embed_layer_forward.1} parent=35 // pred_fallthru
        _
    $region36: #{embed_layer_forward.1} parent=5 // pred_fallthru
      _
    %p359 = scmp.le.s32.totalorder 2, %s10
    // Predicated region
    $region41: #{embed_layer_forward.1} parent=5 // pred_check
      %p360 = pneg %p359
    $region42: #{embed_layer_forward.1} parent=5 // pred_check_branch
      %362 = sbr.rel (%p360) target = $region44
    $region43: #{embed_layer_forward.1} parent=5 // pred_region
      %s363 = ssub.s32 %s10, 2
      // Predicated region
      $region45: #{embed_layer_forward.1} parent=43 // pred_check
        %p364 = pneg %p128
      $region46: #{embed_layer_forward.1} parent=43 // pred_check_branch
        %366 = sbr.rel (%p364) target = $region48
      $region47: #{embed_layer_forward.1} parent=43 // pred_region
        %p367 = scmp.lt.s32.totalorder %s16, 1
        %s368 = scalar_select %p367, %s16, 1
        %s369 = smul.addr %s368, 3
        %s370 = smul.addr %s369, 8
        %s371 = scalar_lea.vmem %s4, %s370
      $region48: #{embed_layer_forward.1} parent=43 // pred_fallthru
        _
    $region44: #{embed_layer_forward.1} parent=5 // pred_fallthru
      _
  $region6: #{embed_layer_forward.1} parent=0 // loop_footer
    %s14 = sadd.s32 1, %s10
  $region7: #{embed_layer_forward.1} parent=0 // loop_footer_branch
    %9 = sbr.rel target = $region3
  $region8: #{embed_layer_forward.1} parent=0 // loop_exit
    _

</llo_original>
